<compile_context>
chip_gen: v5e
topology: v5e:2x2
jax: 0.10.0
libtpu: 0.0.40
codegen_flags: <defaults>
</compile_context>

<pallas_src>
import jax
import jax.numpy as jnp
from jax.experimental import pallas as pl
from jax.experimental.pallas import tpu as pltpu

LANE = 128     # TPU lane width
SUBLANE = 8    # TPU sublane width


def _round_up(n: int, m: int) -> int:
    return ((n + m - 1) // m) * m


def _make_kernel(hp: int, op: int):
    """hp / op are the lane-padded hidden / output widths (multiples of 128)."""

    def kernel(x_ref, w0_ref, b0_ref, w1_ref, b1_ref, w2_ref, b2_ref,
               wc_ref, bc_ref, out_ref):
        # x tile and weights are bf16; accumulate in f32 on the MXU.
        x = x_ref[...]

        # layer0 + ReLU
        x0 = jnp.dot(x, w0_ref[...], preferred_element_type=jnp.float32)
        x0 = jnp.maximum(x0 + b0_ref[...], 0.0)

        # layer1 + residual, ReLU
        x1 = jnp.dot(x0.astype(jnp.bfloat16), w1_ref[...],
                     preferred_element_type=jnp.float32) + b1_ref[...] + x0
        x1 = jnp.maximum(x1, 0.0)

        # layer2 + residual (x2 is the pre-ReLU output; x3=relu(x2) is recomputed
        # in the wrapper, saving one output DMA)
        x2 = jnp.dot(x1.astype(jnp.bfloat16), w2_ref[...],
                     preferred_element_type=jnp.float32) + b2_ref[...] + x1
        x3 = jnp.maximum(x2, 0.0)

        # classifier
        y = jnp.dot(x3.astype(jnp.bfloat16), wc_ref[...],
                    preferred_element_type=jnp.float32) + bc_ref[...]

        # Lane-dense packed output slab [x1 | x2 | y]; every offset is a multiple
        # of 128, so these are full, unmasked vector stores.
        out_ref[:, 0:hp] = x1
        out_ref[:, hp:2 * hp] = x2
        out_ref[:, 2 * hp:2 * hp + op] = y

    return kernel


def _pack_params(params, hp, op):
    """Lane-pad weights to multiples of 128 with zeros (math-preserving) and cast
    them to bf16; biases stay f32 with shape (1, padded)."""
    w0, b0, w1, b1, w2, b2, wc, bc = params

    def pad_w(w, rows, cols):
        return jnp.pad(
            w, ((0, rows - w.shape[0]), (0, cols - w.shape[1]))
        ).astype(jnp.bfloat16)

    def pad_b(b, cols):
        b = b.reshape(1, -1).astype(jnp.float32)
        return jnp.pad(b, ((0, 0), (0, cols - b.shape[1])))

    din = w0.shape[0]
    return (
        pad_w(w0, din, hp), pad_b(b0, hp),
        pad_w(w1, hp, hp), pad_b(b1, hp),
        pad_w(w2, hp, hp), pad_b(b2, hp),
        pad_w(wc, hp, op), pad_b(bc, op),
    )


@jax.jit
def res_linear_net_forward(x, params):
    """x: (B, C, H, W) float32 (NCHW, PyTorch-style).
    params: f32 params with weights stored transposed as (in, out), biases (out,).
    Returns (x1, x2, x3, y) exactly as ResLinearNet.forward."""
    w0 = params[0]
    wc = params[6]
    din = w0.shape[0]
    hid = w0.shape[1]
    nout = wc.shape[1]
    hp = _round_up(hid, LANE)
    op = _round_up(nout, LANE)

    B = x.shape[0]
    x_flat = x.reshape(B, -1)                       # glue: view(B, -1)
    assert x_flat.shape[1] == din

    # Batch tiling: TB rows per grid step (multiple of 8 sublanes); pad B up.
    TB = min(256, _round_up(B, SUBLANE))
    b_pad = _round_up(B, TB)
    x_flat = jnp.pad(x_flat, ((0, b_pad - B), (0, 0))).astype(jnp.bfloat16)

    packed = _pack_params(params, hp, op)
    slab_w = 2 * hp + op

    def batch_spec(cols):
        return pl.BlockSpec((TB, cols), lambda i: (i, 0))

    def resident_spec(shape):
        # Constant index_map -> the block stays VMEM-resident across grid steps.
        return pl.BlockSpec(shape, lambda i: (0, 0))

    in_specs = [batch_spec(din)] + [resident_spec(p.shape) for p in packed]

    slab = pl.pallas_call(
        _make_kernel(hp, op),
        out_shape=jax.ShapeDtypeStruct((b_pad, slab_w), jnp.float32),
        grid=(b_pad // TB,),
        in_specs=in_specs,
        out_specs=batch_spec(slab_w),
        compiler_params=pltpu.CompilerParams(
            dimension_semantics=("parallel",)),
    )(x_flat, *packed)

    x1 = slab[:B, 0:hid]
    x2 = slab[:B, hp:hp + hid]
    x3 = jnp.maximum(x2, 0.0)        # relu2: exact recompute of the dropped output
    y = slab[:B, 2 * hp:2 * hp + nout]
    return x1, x2, x3, y


def init_params(key, in_channels, hidden_channels, out_channels):
    """Deterministic PyTorch-Linear-style init. Weights stored as (in, out)."""
    def linear_init(k, fan_in, fan_out):
        kw, kb = jax.random.split(k)
        bound = 1.0 / jnp.sqrt(jnp.float32(fan_in))
        w = jax.random.uniform(kw, (fan_in, fan_out), jnp.float32, -bound, bound)
        b = jax.random.uniform(kb, (fan_out,), jnp.float32, -bound, bound)
        return w, b

    k0, k1, k2, k3 = jax.random.split(key, 4)
    w0, b0 = linear_init(k0, in_channels, hidden_channels)
    w1, b1 = linear_init(k1, hidden_channels, hidden_channels)
    w2, b2 = linear_init(k2, hidden_channels, hidden_channels)
    wc, bc = linear_init(k3, hidden_channels, out_channels)
    return (w0, b0, w1, b1, w2, b2, wc, bc)


def _reference_forward(x, params):
    """Pure-JAX reference with the same bf16-weight / bf16-activation, f32-accumulate
    numerics as the kernel."""
    w0, b0, w1, b1, w2, b2, wc, bc = params
    bf = lambda a: a.astype(jnp.bfloat16)

    def lin(a, w, b):
        return jnp.dot(bf(a), bf(w), preferred_element_type=jnp.float32) + b

    xf = x.reshape(x.shape[0], -1)
    x0 = jnp.maximum(lin(xf, w0, b0), 0.0)
    x1 = jnp.maximum(lin(x0, w1, b1) + x0, 0.0)
    x2 = lin(x1, w2, b2) + x1
    x3 = jnp.maximum(x2, 0.0)
    y = lin(x3, wc, bc)
    return x1, x2, x3, y


if __name__ == "__main__":
    key = jax.random.PRNGKey(0)
    k_x, k_p = jax.random.split(key)

    # Small MNIST-like shapes: batch=2, 4 channels, 16x16 spatial -> Din = 1024
    B, C, Himg, Wimg = 2, 4, 16, 16
    in_channels = C * Himg * Wimg
    hidden_channels = 32
    out_channels = 10

    x = jax.random.normal(k_x, (B, C, Himg, Wimg), jnp.float32)
    params = init_params(k_p, in_channels, hidden_channels, out_channels)

    outs = jax.block_until_ready(res_linear_net_forward(x, params))

    # sanity check vs pure-JAX reference (same bf16/f32 numerics as the kernel)
    refs = _reference_forward(x, params)
    for o, r in zip(outs, refs):
        assert o.shape == r.shape, (o.shape, r.shape)
        err = float(jnp.max(jnp.abs(o - r)))
        assert err < 1e-2, err

    print("KERNEL_OK")
</pallas_src>

<mosaic_0001>
module attributes {stable_mosaic.version = 11 : i64} {
  func.func @kernel(%arg0: i32, %arg1: memref<8x1024xbf16, #tpu.memory_space<vmem>>, %arg2: memref<1024x128xbf16, #tpu.memory_space<vmem>>, %arg3: memref<1x128xf32, #tpu.memory_space<vmem>>, %arg4: memref<128x128xbf16, #tpu.memory_space<vmem>>, %arg5: memref<1x128xf32, #tpu.memory_space<vmem>>, %arg6: memref<128x128xbf16, #tpu.memory_space<vmem>>, %arg7: memref<1x128xf32, #tpu.memory_space<vmem>>, %arg8: memref<128x128xbf16, #tpu.memory_space<vmem>>, %arg9: memref<1x128xf32, #tpu.memory_space<vmem>>, %arg10: memref<8x384xf32, #tpu.memory_space<vmem>>) attributes {dimension_semantics = [#tpu.dimension_semantics<parallel>], iteration_bounds = array<i64: 1>, scalar_prefetch = 0 : i64, scratch_operands = 0 : i64, tpu.core_type = #tpu.core_type<tc>, window_params = [{transform_indices = @transform_0, window_bounds = array<i64: 8, 1024>}, {pipeline_mode = #tpu.pipeline_mode<synchronous>, transform_indices = @transform_1, window_bounds = array<i64: 1024, 128>}, {pipeline_mode = #tpu.pipeline_mode<synchronous>, transform_indices = @transform_2, window_bounds = array<i64: 1, 128>}, {pipeline_mode = #tpu.pipeline_mode<synchronous>, transform_indices = @transform_3, window_bounds = array<i64: 128, 128>}, {pipeline_mode = #tpu.pipeline_mode<synchronous>, transform_indices = @transform_4, window_bounds = array<i64: 1, 128>}, {pipeline_mode = #tpu.pipeline_mode<synchronous>, transform_indices = @transform_5, window_bounds = array<i64: 128, 128>}, {pipeline_mode = #tpu.pipeline_mode<synchronous>, transform_indices = @transform_6, window_bounds = array<i64: 1, 128>}, {pipeline_mode = #tpu.pipeline_mode<synchronous>, transform_indices = @transform_7, window_bounds = array<i64: 128, 128>}, {pipeline_mode = #tpu.pipeline_mode<synchronous>, transform_indices = @transform_8, window_bounds = array<i64: 1, 128>}, {transform_indices = @transform_9, window_bounds = array<i64: 8, 384>}]} {
    %c0 = arith.constant 0 : index
    %c0_0 = arith.constant 0 : index
    %0 = vector.load %arg1[%c0, %c0_0] : memref<8x1024xbf16, #tpu.memory_space<vmem>>, vector<8x1024xbf16>
    %c0_1 = arith.constant 0 : index
    %c0_2 = arith.constant 0 : index
    %1 = vector.load %arg2[%c0_1, %c0_2] : memref<1024x128xbf16, #tpu.memory_space<vmem>>, vector<1024x128xbf16>
    %cst = arith.constant dense<0.000000e+00> : vector<8x128xf32>
    %2 = tpu.matmul %0, %1, %cst {dimension_numbers = #tpu.dot_dimension_numbers<[1], [0], [0], [1], [0, 0, 1, 1], [], []>} : vector<8x1024xbf16>, vector<1024x128xbf16>, vector<8x128xf32> -> vector<8x128xf32>
    %c0_3 = arith.constant 0 : index
    %c0_4 = arith.constant 0 : index
    %3 = vector.load %arg3[%c0_3, %c0_4] : memref<1x128xf32, #tpu.memory_space<vmem>>, vector<1x128xf32>
    %4 = vector.broadcast %3 : vector<1x128xf32> to vector<8x128xf32>
    %5 = arith.addf %2, %4 : vector<8x128xf32>
    %cst_5 = arith.constant 0.000000e+00 : f32
    %6 = vector.broadcast %cst_5 : f32 to vector<8x128xf32>
    %7 = arith.maximumf %5, %6 : vector<8x128xf32>
    %8 = arith.truncf %7 : vector<8x128xf32> to vector<8x128xbf16>
    %c0_6 = arith.constant 0 : index
    %c0_7 = arith.constant 0 : index
    %9 = vector.load %arg4[%c0_6, %c0_7] : memref<128x128xbf16, #tpu.memory_space<vmem>>, vector<128x128xbf16>
    %cst_8 = arith.constant dense<0.000000e+00> : vector<8x128xf32>
    %10 = tpu.matmul %8, %9, %cst_8 {dimension_numbers = #tpu.dot_dimension_numbers<[1], [0], [0], [1], [0, 0, 1, 1], [], []>} : vector<8x128xbf16>, vector<128x128xbf16>, vector<8x128xf32> -> vector<8x128xf32>
    %c0_9 = arith.constant 0 : index
    %c0_10 = arith.constant 0 : index
    %11 = vector.load %arg5[%c0_9, %c0_10] : memref<1x128xf32, #tpu.memory_space<vmem>>, vector<1x128xf32>
    %12 = vector.broadcast %11 : vector<1x128xf32> to vector<8x128xf32>
    %13 = arith.addf %10, %12 : vector<8x128xf32>
    %14 = arith.addf %13, %7 : vector<8x128xf32>
    %cst_11 = arith.constant 0.000000e+00 : f32
    %15 = vector.broadcast %cst_11 : f32 to vector<8x128xf32>
    %16 = arith.maximumf %14, %15 : vector<8x128xf32>
    %17 = arith.truncf %16 : vector<8x128xf32> to vector<8x128xbf16>
    %c0_12 = arith.constant 0 : index
    %c0_13 = arith.constant 0 : index
    %18 = vector.load %arg6[%c0_12, %c0_13] : memref<128x128xbf16, #tpu.memory_space<vmem>>, vector<128x128xbf16>
    %cst_14 = arith.constant dense<0.000000e+00> : vector<8x128xf32>
    %19 = tpu.matmul %17, %18, %cst_14 {dimension_numbers = #tpu.dot_dimension_numbers<[1], [0], [0], [1], [0, 0, 1, 1], [], []>} : vector<8x128xbf16>, vector<128x128xbf16>, vector<8x128xf32> -> vector<8x128xf32>
    %c0_15 = arith.constant 0 : index
    %c0_16 = arith.constant 0 : index
    %20 = vector.load %arg7[%c0_15, %c0_16] : memref<1x128xf32, #tpu.memory_space<vmem>>, vector<1x128xf32>
    %21 = vector.broadcast %20 : vector<1x128xf32> to vector<8x128xf32>
    %22 = arith.addf %19, %21 : vector<8x128xf32>
    %23 = arith.addf %22, %16 : vector<8x128xf32>
    %cst_17 = arith.constant 0.000000e+00 : f32
    %24 = vector.broadcast %cst_17 : f32 to vector<8x128xf32>
    %25 = arith.maximumf %23, %24 : vector<8x128xf32>
    %26 = arith.truncf %25 : vector<8x128xf32> to vector<8x128xbf16>
    %c0_18 = arith.constant 0 : index
    %c0_19 = arith.constant 0 : index
    %27 = vector.load %arg8[%c0_18, %c0_19] : memref<128x128xbf16, #tpu.memory_space<vmem>>, vector<128x128xbf16>
    %cst_20 = arith.constant dense<0.000000e+00> : vector<8x128xf32>
    %28 = tpu.matmul %26, %27, %cst_20 {dimension_numbers = #tpu.dot_dimension_numbers<[1], [0], [0], [1], [0, 0, 1, 1], [], []>} : vector<8x128xbf16>, vector<128x128xbf16>, vector<8x128xf32> -> vector<8x128xf32>
    %c0_21 = arith.constant 0 : index
    %c0_22 = arith.constant 0 : index
    %29 = vector.load %arg9[%c0_21, %c0_22] : memref<1x128xf32, #tpu.memory_space<vmem>>, vector<1x128xf32>
    %30 = vector.broadcast %29 : vector<1x128xf32> to vector<8x128xf32>
    %31 = arith.addf %28, %30 : vector<8x128xf32>
    %c0_23 = arith.constant 0 : index
    %c0_24 = arith.constant 0 : index
    %32 = vector.load %arg10[%c0_23, %c0_24] : memref<8x384xf32, #tpu.memory_space<vmem>>, vector<8x128xf32>
    tpu.vector_store %arg10[%c0_23, %c0_24], %16 {strides = array<i32>} : memref<8x384xf32, #tpu.memory_space<vmem>>, vector<8x128xf32>,
    %c0_25 = arith.constant 0 : index
    %c128 = arith.constant 128 : index
    %33 = vector.load %arg10[%c0_25, %c128] : memref<8x384xf32, #tpu.memory_space<vmem>>, vector<8x128xf32>
    tpu.vector_store %arg10[%c0_25, %c128], %23 {strides = array<i32>} : memref<8x384xf32, #tpu.memory_space<vmem>>, vector<8x128xf32>,
    %c0_26 = arith.constant 0 : index
    %c256 = arith.constant 256 : index
    %34 = vector.load %arg10[%c0_26, %c256] : memref<8x384xf32, #tpu.memory_space<vmem>>, vector<8x128xf32>
    tpu.vector_store %arg10[%c0_26, %c256], %31 {strides = array<i32>} : memref<8x384xf32, #tpu.memory_space<vmem>>, vector<8x128xf32>,
    return
  }
  func.func @transform_0(%arg0: i32) -> (i32, i32) {
    %c0_i32 = arith.constant 0 : i32
    %c0_i32_0 = arith.constant 0 : i32
    return %arg0, %c0_i32 : i32, i32
  }
  func.func @transform_1(%arg0: i32) -> (i32, i32) {
    %c0_i32 = arith.constant 0 : i32
    %c0_i32_0 = arith.constant 0 : i32
    %c0_i32_1 = arith.constant 0 : i32
    return %c0_i32, %c0_i32_0 : i32, i32
  }
  func.func @transform_2(%arg0: i32) -> (i32, i32) {
    %c0_i32 = arith.constant 0 : i32
    %c0_i32_0 = arith.constant 0 : i32
    %c0_i32_1 = arith.constant 0 : i32
    return %c0_i32, %c0_i32_0 : i32, i32
  }
  func.func @transform_3(%arg0: i32) -> (i32, i32) {
    %c0_i32 = arith.constant 0 : i32
    %c0_i32_0 = arith.constant 0 : i32
    %c0_i32_1 = arith.constant 0 : i32
    return %c0_i32, %c0_i32_0 : i32, i32
  }
  func.func @transform_4(%arg0: i32) -> (i32, i32) {
    %c0_i32 = arith.constant 0 : i32
    %c0_i32_0 = arith.constant 0 : i32
    %c0_i32_1 = arith.constant 0 : i32
    return %c0_i32, %c0_i32_0 : i32, i32
  }
  func.func @transform_5(%arg0: i32) -> (i32, i32) {
    %c0_i32 = arith.constant 0 : i32
    %c0_i32_0 = arith.constant 0 : i32
    %c0_i32_1 = arith.constant 0 : i32
    return %c0_i32, %c0_i32_0 : i32, i32
  }
  func.func @transform_6(%arg0: i32) -> (i32, i32) {
    %c0_i32 = arith.constant 0 : i32
    %c0_i32_0 = arith.constant 0 : i32
    %c0_i32_1 = arith.constant 0 : i32
    return %c0_i32, %c0_i32_0 : i32, i32
  }
  func.func @transform_7(%arg0: i32) -> (i32, i32) {
    %c0_i32 = arith.constant 0 : i32
    %c0_i32_0 = arith.constant 0 : i32
    %c0_i32_1 = arith.constant 0 : i32
    return %c0_i32, %c0_i32_0 : i32, i32
  }
  func.func @transform_8(%arg0: i32) -> (i32, i32) {
    %c0_i32 = arith.constant 0 : i32
    %c0_i32_0 = arith.constant 0 : i32
    %c0_i32_1 = arith.constant 0 : i32
    return %c0_i32, %c0_i32_0 : i32, i32
  }
  func.func @transform_9(%arg0: i32) -> (i32, i32) {
    %c0_i32 = arith.constant 0 : i32
    %c0_i32_0 = arith.constant 0 : i32
    return %arg0, %c0_i32 : i32, i32
  }
}

</mosaic_0001>

<llo_original>
// kernel: res_linear_net_forward.1
$region0: #{res_linear_net_forward.1}
  #allocation0 [shape = 'u32[]', space=smem, size = 0x4, offset = 0x4, fixed_abs, tag = 'smem constant byte address 0x4 - core index']
  #allocation1 [shape = 'u32[72,128]{1,0:T(1,128)}', space=vmem, size = 0x9000, scoped, tag = 'internal scratch']
  %s0 = inlined_call_operand.vmem [shape: bf16[8,1024], index: 0, kind: input, shape index: {}]
  %s1 = inlined_call_operand.vmem [shape: bf16[1024,128], index: 1, kind: input, shape index: {}]
  %s2 = inlined_call_operand.vmem [shape: f32[1,128], index: 2, kind: input, shape index: {}]
  %s3 = inlined_call_operand.vmem [shape: bf16[128,128], index: 3, kind: input, shape index: {}]
  %s4 = inlined_call_operand.vmem [shape: f32[1,128], index: 4, kind: input, shape index: {}]
  %s5 = inlined_call_operand.vmem [shape: bf16[128,128], index: 5, kind: input, shape index: {}]
  %s6 = inlined_call_operand.vmem [shape: f32[1,128], index: 6, kind: input, shape index: {}]
  %s7 = inlined_call_operand.vmem [shape: bf16[128,128], index: 7, kind: input, shape index: {}]
  %s8 = inlined_call_operand.vmem [shape: f32[1,128], index: 8, kind: input, shape index: {}]
  %s9 = inlined_call_operand.vmem [shape: f32[8,384], index: 9, kind: output, shape index: {}]
  %s10 = sld [smem:[#allocation0]]
  $region46: #{res_linear_net_forward.1} parent=0
    _
  %s12 = ssub.s32 1, %s10
  %s13 = scalar_select 0, %s12, %s10
  // Predicated region
  $region2: #{res_linear_net_forward.1} parent=0 // pred_check
    _
  $region3: #{res_linear_net_forward.1} parent=0 // pred_check_branch
    %15 = sbr.rel (0) target = $region5
  $region4: #{res_linear_net_forward.1} parent=0 // pred_region
    _
  $region5: #{res_linear_net_forward.1} parent=0 // pred_fallthru
    _
  // Predicated region
  $region6: #{res_linear_net_forward.1} parent=0 // pred_check
    _
  $region7: #{res_linear_net_forward.1} parent=0 // pred_check_branch
    %17 = sbr.rel (0) target = $region9
  $region8: #{res_linear_net_forward.1} parent=0 // pred_region
    _
  $region9: #{res_linear_net_forward.1} parent=0 // pred_fallthru
    _
  // Predicated region
  $region10: #{res_linear_net_forward.1} parent=0 // pred_check
    _
  $region11: #{res_linear_net_forward.1} parent=0 // pred_check_branch
    %19 = sbr.rel (0) target = $region13
  $region12: #{res_linear_net_forward.1} parent=0 // pred_region
    _
  $region13: #{res_linear_net_forward.1} parent=0 // pred_fallthru
    _
  // Predicated region
  $region14: #{res_linear_net_forward.1} parent=0 // pred_check
    _
  $region15: #{res_linear_net_forward.1} parent=0 // pred_check_branch
    %21 = sbr.rel (0) target = $region17
  $region16: #{res_linear_net_forward.1} parent=0 // pred_region
    _
  $region17: #{res_linear_net_forward.1} parent=0 // pred_fallthru
    _
  // Predicated region
  $region18: #{res_linear_net_forward.1} parent=0 // pred_check
    _
  $region19: #{res_linear_net_forward.1} parent=0 // pred_check_branch
    %23 = sbr.rel (0) target = $region21
  $region20: #{res_linear_net_forward.1} parent=0 // pred_region
    _
  $region21: #{res_linear_net_forward.1} parent=0 // pred_fallthru
    _
  // Predicated region
  $region22: #{res_linear_net_forward.1} parent=0 // pred_check
    _
  $region23: #{res_linear_net_forward.1} parent=0 // pred_check_branch
    %25 = sbr.rel (0) target = $region25
  $region24: #{res_linear_net_forward.1} parent=0 // pred_region
    _
  $region25: #{res_linear_net_forward.1} parent=0 // pred_fallthru
    _
  // Predicated region
  $region26: #{res_linear_net_forward.1} parent=0 // pred_check
    _
  $region27: #{res_linear_net_forward.1} parent=0 // pred_check_branch
    %27 = sbr.rel (0) target = $region29
  $region28: #{res_linear_net_forward.1} parent=0 // pred_region
    _
  $region29: #{res_linear_net_forward.1} parent=0 // pred_fallthru
    _
  // Predicated region
  $region30: #{res_linear_net_forward.1} parent=0 // pred_check
    _
  $region31: #{res_linear_net_forward.1} parent=0 // pred_check_branch
    %29 = sbr.rel (0) target = $region33
  $region32: #{res_linear_net_forward.1} parent=0 // pred_region
    _
  $region33: #{res_linear_net_forward.1} parent=0 // pred_fallthru
    _
  // Predicated region
  $region34: #{res_linear_net_forward.1} parent=0 // pred_check
    _
  $region35: #{res_linear_net_forward.1} parent=0 // pred_check_branch
    %31 = sbr.rel (0) target = $region37
  $region36: #{res_linear_net_forward.1} parent=0 // pred_region
    _
  $region37: #{res_linear_net_forward.1} parent=0 // pred_fallthru
    _
  %v32 = vld [vmem:[%s0] sm:$0xff]
  %v33 = vld [vmem:[%s0 + $0x8] sm:$0xff]
  %v34 = vld [vmem:[%s0 + $0x10] sm:$0xff]
  %v35 = vld [vmem:[%s0 + $0x18] sm:$0xff]
  %v36 = vld [vmem:[%s1] sm:$0xf]
  %v37 = vld [vmem:[%s1 + $0x4] sm:$0xf]
  %v38 = vld [vmem:[%s1 + $0x8] sm:$0xf]
  %v39 = vld [vmem:[%s1 + $0xc] sm:$0xf]
  %v40 = vld [vmem:[%s1 + $0x10] sm:$0xf]
  %v41 = vld [vmem:[%s1 + $0x14] sm:$0xf]
  %v42 = vld [vmem:[%s1 + $0x18] sm:$0xf]
  %v43 = vld [vmem:[%s1 + $0x1c] sm:$0xf]
  %v44 = vld [vmem:[%s1 + $0x20] sm:$0xf]
  %v45 = vld [vmem:[%s1 + $0x24] sm:$0xf]
  %v46 = vld [vmem:[%s1 + $0x28] sm:$0xf]
  %v47 = vld [vmem:[%s1 + $0x2c] sm:$0xf]
  %v48 = vld [vmem:[%s1 + $0x30] sm:$0xf]
  %v49 = vld [vmem:[%s1 + $0x34] sm:$0xf]
  %v50 = vld [vmem:[%s1 + $0x38] sm:$0xf]
  %v51 = vld [vmem:[%s1 + $0x3c] sm:$0xf]
  %v52 = vld [vmem:[%s1 + $0x40] sm:$0xf]
  %v53 = vld [vmem:[%s1 + $0x44] sm:$0xf]
  %v54 = vld [vmem:[%s1 + $0x48] sm:$0xf]
  %v55 = vld [vmem:[%s1 + $0x4c] sm:$0xf]
  %v56 = vld [vmem:[%s1 + $0x50] sm:$0xf]
  %v57 = vld [vmem:[%s1 + $0x54] sm:$0xf]
  %v58 = vld [vmem:[%s1 + $0x58] sm:$0xf]
  %v59 = vld [vmem:[%s1 + $0x5c] sm:$0xf]
  %v60 = vld [vmem:[%s1 + $0x60] sm:$0xf]
  %v61 = vld [vmem:[%s1 + $0x64] sm:$0xf]
  %v62 = vld [vmem:[%s1 + $0x68] sm:$0xf]
  %v63 = vld [vmem:[%s1 + $0x6c] sm:$0xf]
  %v64 = vld [vmem:[%s1 + $0x70] sm:$0xf]
  %v65 = vld [vmem:[%s1 + $0x74] sm:$0xf]
  %v66 = vld [vmem:[%s1 + $0x78] sm:$0xf]
  %v67 = vld [vmem:[%s1 + $0x7c] sm:$0xf]
  %v68 = vld [vmem:[%s1 + $0x80] sm:$0xf]
  %v69 = vld [vmem:[%s1 + $0x84] sm:$0xf]
  %v70 = vld [vmem:[%s1 + $0x88] sm:$0xf]
  %v71 = vld [vmem:[%s1 + $0x8c] sm:$0xf]
  %v72 = vld [vmem:[%s1 + $0x90] sm:$0xf]
  %v73 = vld [vmem:[%s1 + $0x94] sm:$0xf]
  %v74 = vld [vmem:[%s1 + $0x98] sm:$0xf]
  %v75 = vld [vmem:[%s1 + $0x9c] sm:$0xf]
  %v76 = vld [vmem:[%s1 + $0xa0] sm:$0xf]
  %v77 = vld [vmem:[%s1 + $0xa4] sm:$0xf]
  %v78 = vld [vmem:[%s1 + $0xa8] sm:$0xf]
  %v79 = vld [vmem:[%s1 + $0xac] sm:$0xf]
  %v80 = vld [vmem:[%s1 + $0xb0] sm:$0xf]
  %v81 = vld [vmem:[%s1 + $0xb4] sm:$0xf]
  %v82 = vld [vmem:[%s1 + $0xb8] sm:$0xf]
  %v83 = vld [vmem:[%s1 + $0xbc] sm:$0xf]
  %v84 = vld [vmem:[%s1 + $0xc0] sm:$0xf]
  %v85 = vld [vmem:[%s1 + $0xc4] sm:$0xf]
  %v86 = vld [vmem:[%s1 + $0xc8] sm:$0xf]
  %v87 = vld [vmem:[%s1 + $0xcc] sm:$0xf]
  %v88 = vld [vmem:[%s1 + $0xd0] sm:$0xf]
  %v89 = vld [vmem:[%s1 + $0xd4] sm:$0xf]
  %v90 = vld [vmem:[%s1 + $0xd8] sm:$0xf]
  %v91 = vld [vmem:[%s1 + $0xdc] sm:$0xf]
  %v92 = vld [vmem:[%s1 + $0xe0] sm:$0xf]
  %v93 = vld [vmem:[%s1 + $0xe4] sm:$0xf]
  %v94 = vld [vmem:[%s1 + $0xe8] sm:$0xf]
  %v95 = vld [vmem:[%s1 + $0xec] sm:$0xf]
  %v96 = vld [vmem:[%s1 + $0xf0] sm:$0xf]
  %v97 = vld [vmem:[%s1 + $0xf4] sm:$0xf]
  %v98 = vld [vmem:[%s1 + $0xf8] sm:$0xf]
  %v99 = vld [vmem:[%s1 + $0xfc] sm:$0xf]
  %v100 = vld [vmem:[%s1 + $0x100] sm:$0xf]
  %v101 = vld [vmem:[%s1 + $0x104] sm:$0xf]
  %v102 = vld [vmem:[%s1 + $0x108] sm:$0xf]
  %v103 = vld [vmem:[%s1 + $0x10c] sm:$0xf]
  %v104 = vld [vmem:[%s1 + $0x110] sm:$0xf]
  %v105 = vld [vmem:[%s1 + $0x114] sm:$0xf]
  %v106 = vld [vmem:[%s1 + $0x118] sm:$0xf]
  %v107 = vld [vmem:[%s1 + $0x11c] sm:$0xf]
  %v108 = vld [vmem:[%s1 + $0x120] sm:$0xf]
  %v109 = vld [vmem:[%s1 + $0x124] sm:$0xf]
  %v110 = vld [vmem:[%s1 + $0x128] sm:$0xf]
  %v111 = vld [vmem:[%s1 + $0x12c] sm:$0xf]
  %v112 = vld [vmem:[%s1 + $0x130] sm:$0xf]
  %v113 = vld [vmem:[%s1 + $0x134] sm:$0xf]
  %v114 = vld [vmem:[%s1 + $0x138] sm:$0xf]
  %v115 = vld [vmem:[%s1 + $0x13c] sm:$0xf]
  %v116 = vld [vmem:[%s1 + $0x140] sm:$0xf]
  %v117 = vld [vmem:[%s1 + $0x144] sm:$0xf]
  %v118 = vld [vmem:[%s1 + $0x148] sm:$0xf]
  %v119 = vld [vmem:[%s1 + $0x14c] sm:$0xf]
  %v120 = vld [vmem:[%s1 + $0x150] sm:$0xf]
  %v121 = vld [vmem:[%s1 + $0x154] sm:$0xf]
  %v122 = vld [vmem:[%s1 + $0x158] sm:$0xf]
  %v123 = vld [vmem:[%s1 + $0x15c] sm:$0xf]
  %v124 = vld [vmem:[%s1 + $0x160] sm:$0xf]
  %v125 = vld [vmem:[%s1 + $0x164] sm:$0xf]
  %v126 = vld [vmem:[%s1 + $0x168] sm:$0xf]
  %v127 = vld [vmem:[%s1 + $0x16c] sm:$0xf]
  %v128 = vld [vmem:[%s1 + $0x170] sm:$0xf]
  %v129 = vld [vmem:[%s1 + $0x174] sm:$0xf]
  %v130 = vld [vmem:[%s1 + $0x178] sm:$0xf]
  %v131 = vld [vmem:[%s1 + $0x17c] sm:$0xf]
  %v132 = vld [vmem:[%s1 + $0x180] sm:$0xf]
  %v133 = vld [vmem:[%s1 + $0x184] sm:$0xf]
  %v134 = vld [vmem:[%s1 + $0x188] sm:$0xf]
  %v135 = vld [vmem:[%s1 + $0x18c] sm:$0xf]
  %v136 = vld [vmem:[%s1 + $0x190] sm:$0xf]
  %v137 = vld [vmem:[%s1 + $0x194] sm:$0xf]
  %v138 = vld [vmem:[%s1 + $0x198] sm:$0xf]
  %v139 = vld [vmem:[%s1 + $0x19c] sm:$0xf]
  %v140 = vld [vmem:[%s1 + $0x1a0] sm:$0xf]
  %v141 = vld [vmem:[%s1 + $0x1a4] sm:$0xf]
  %v142 = vld [vmem:[%s1 + $0x1a8] sm:$0xf]
  %v143 = vld [vmem:[%s1 + $0x1ac] sm:$0xf]
  %v144 = vld [vmem:[%s1 + $0x1b0] sm:$0xf]
  %v145 = vld [vmem:[%s1 + $0x1b4] sm:$0xf]
  %v146 = vld [vmem:[%s1 + $0x1b8] sm:$0xf]
  %v147 = vld [vmem:[%s1 + $0x1bc] sm:$0xf]
  %v148 = vld [vmem:[%s1 + $0x1c0] sm:$0xf]
  %v149 = vld [vmem:[%s1 + $0x1c4] sm:$0xf]
  %v150 = vld [vmem:[%s1 + $0x1c8] sm:$0xf]
  %v151 = vld [vmem:[%s1 + $0x1cc] sm:$0xf]
  %v152 = vld [vmem:[%s1 + $0x1d0] sm:$0xf]
  %v153 = vld [vmem:[%s1 + $0x1d4] sm:$0xf]
  %v154 = vld [vmem:[%s1 + $0x1d8] sm:$0xf]
  %v155 = vld [vmem:[%s1 + $0x1dc] sm:$0xf]
  %v156 = vld [vmem:[%s1 + $0x1e0] sm:$0xf]
  %v157 = vld [vmem:[%s1 + $0x1e4] sm:$0xf]
  %v158 = vld [vmem:[%s1 + $0x1e8] sm:$0xf]
  %v159 = vld [vmem:[%s1 + $0x1ec] sm:$0xf]
  %v160 = vld [vmem:[%s1 + $0x1f0] sm:$0xf]
  %v161 = vld [vmem:[%s1 + $0x1f4] sm:$0xf]
  %v162 = vld [vmem:[%s1 + $0x1f8] sm:$0xf]
  %v163 = vld [vmem:[%s1 + $0x1fc] sm:$0xf]
  %v164 = vld [vmem:[%s2] sm:$0x1]
  %v166 = vperm.slane %v164, 0
  %v172 = vunpack.c.l.b16 %v32
  %v173 = vunpack.c.h.b16 %v32
  %v174 = vunpack.c.l.b16 %v33
  %v175 = vunpack.c.h.b16 %v33
  %v176 = vunpack.c.l.b16 %v34
  %v177 = vunpack.c.h.b16 %v34
  %v178 = vunpack.c.l.b16 %v35
  %v179 = vunpack.c.h.b16 %v35
  %v180 = vpack.c.b16 %v172, %v172
  %v181 = vpack.c.b16 %v173, %v173
  %v182 = vpack.c.b16 %v174, %v174
  %v183 = vpack.c.b16 %v175, %v175
  %v184 = vpack.c.b16 %v176, %v176
  %v185 = vpack.c.b16 %v177, %v177
  %v186 = vpack.c.b16 %v178, %v178
  %v187 = vpack.c.b16 %v179, %v179
  %v324 = vunpack.c.l.b16 %v36
  %v325 = vunpack.c.l.b16 %v37
  %v326 = vunpack.c.l.b16 %v38
  %v327 = vunpack.c.l.b16 %v39
  %v328 = vunpack.c.l.b16 %v40
  %v329 = vunpack.c.l.b16 %v41
  %v330 = vunpack.c.l.b16 %v42
  %v331 = vunpack.c.l.b16 %v43
  %v332 = vunpack.c.l.b16 %v44
  %v333 = vunpack.c.l.b16 %v45
  %v334 = vunpack.c.l.b16 %v46
  %v335 = vunpack.c.l.b16 %v47
  %v336 = vunpack.c.l.b16 %v48
  %v337 = vunpack.c.l.b16 %v49
  %v338 = vunpack.c.l.b16 %v50
  %v339 = vunpack.c.l.b16 %v51
  %v340 = vunpack.c.l.b16 %v52
  %v341 = vunpack.c.l.b16 %v53
  %v342 = vunpack.c.l.b16 %v54
  %v343 = vunpack.c.l.b16 %v55
  %v344 = vunpack.c.l.b16 %v56
  %v345 = vunpack.c.l.b16 %v57
  %v346 = vunpack.c.l.b16 %v58
  %v347 = vunpack.c.l.b16 %v59
  %v348 = vunpack.c.l.b16 %v60
  %v349 = vunpack.c.l.b16 %v61
  %v350 = vunpack.c.l.b16 %v62
  %v351 = vunpack.c.l.b16 %v63
  %v352 = vunpack.c.l.b16 %v64
  %v353 = vunpack.c.l.b16 %v65
  %v354 = vunpack.c.l.b16 %v66
  %v355 = vunpack.c.l.b16 %v67
  %v356 = vunpack.c.l.b16 %v68
  %v357 = vunpack.c.l.b16 %v69
  %v358 = vunpack.c.l.b16 %v70
  %v359 = vunpack.c.l.b16 %v71
  %v360 = vunpack.c.l.b16 %v72
  %v361 = vunpack.c.l.b16 %v73
  %v362 = vunpack.c.l.b16 %v74
  %v363 = vunpack.c.l.b16 %v75
  %v364 = vunpack.c.l.b16 %v76
  %v365 = vunpack.c.l.b16 %v77
  %v366 = vunpack.c.l.b16 %v78
  %v367 = vunpack.c.l.b16 %v79
  %v368 = vunpack.c.l.b16 %v80
  %v369 = vunpack.c.l.b16 %v81
  %v370 = vunpack.c.l.b16 %v82
  %v371 = vunpack.c.l.b16 %v83
  %v372 = vunpack.c.l.b16 %v84
  %v373 = vunpack.c.l.b16 %v85
  %v374 = vunpack.c.l.b16 %v86
  %v375 = vunpack.c.l.b16 %v87
  %v376 = vunpack.c.l.b16 %v88
  %v377 = vunpack.c.l.b16 %v89
  %v378 = vunpack.c.l.b16 %v90
  %v379 = vunpack.c.l.b16 %v91
  %v380 = vunpack.c.l.b16 %v92
  %v381 = vunpack.c.l.b16 %v93
  %v382 = vunpack.c.l.b16 %v94
  %v383 = vunpack.c.l.b16 %v95
  %v384 = vunpack.c.l.b16 %v96
  %v385 = vunpack.c.l.b16 %v97
  %v386 = vunpack.c.l.b16 %v98
  %v387 = vunpack.c.l.b16 %v99
  %v388 = vunpack.c.l.b16 %v100
  %v389 = vunpack.c.l.b16 %v101
  %v390 = vunpack.c.l.b16 %v102
  %v391 = vunpack.c.l.b16 %v103
  %v392 = vunpack.c.l.b16 %v104
  %v393 = vunpack.c.l.b16 %v105
  %v394 = vunpack.c.l.b16 %v106
  %v395 = vunpack.c.l.b16 %v107
  %v396 = vunpack.c.l.b16 %v108
  %v397 = vunpack.c.l.b16 %v109
  %v398 = vunpack.c.l.b16 %v110
  %v399 = vunpack.c.l.b16 %v111
  %v400 = vunpack.c.l.b16 %v112
  %v401 = vunpack.c.l.b16 %v113
  %v402 = vunpack.c.l.b16 %v114
  %v403 = vunpack.c.l.b16 %v115
  %v404 = vunpack.c.l.b16 %v116
  %v405 = vunpack.c.l.b16 %v117
  %v406 = vunpack.c.l.b16 %v118
  %v407 = vunpack.c.l.b16 %v119
  %v408 = vunpack.c.l.b16 %v120
  %v409 = vunpack.c.l.b16 %v121
  %v410 = vunpack.c.l.b16 %v122
  %v411 = vunpack.c.l.b16 %v123
  %v412 = vunpack.c.l.b16 %v124
  %v413 = vunpack.c.l.b16 %v125
  %v414 = vunpack.c.l.b16 %v126
  %v415 = vunpack.c.l.b16 %v127
  %v416 = vunpack.c.l.b16 %v128
  %v417 = vunpack.c.l.b16 %v129
  %v418 = vunpack.c.l.b16 %v130
  %v419 = vunpack.c.l.b16 %v131
  %v420 = vunpack.c.l.b16 %v132
  %v421 = vunpack.c.l.b16 %v133
  %v422 = vunpack.c.l.b16 %v134
  %v423 = vunpack.c.l.b16 %v135
  %v424 = vunpack.c.l.b16 %v136
  %v425 = vunpack.c.l.b16 %v137
  %v426 = vunpack.c.l.b16 %v138
  %v427 = vunpack.c.l.b16 %v139
  %v428 = vunpack.c.l.b16 %v140
  %v429 = vunpack.c.l.b16 %v141
  %v430 = vunpack.c.l.b16 %v142
  %v431 = vunpack.c.l.b16 %v143
  %v432 = vunpack.c.l.b16 %v144
  %v433 = vunpack.c.l.b16 %v145
  %v434 = vunpack.c.l.b16 %v146
  %v435 = vunpack.c.l.b16 %v147
  %v436 = vunpack.c.l.b16 %v148
  %v437 = vunpack.c.l.b16 %v149
  %v438 = vunpack.c.l.b16 %v150
  %v439 = vunpack.c.l.b16 %v151
  %v440 = vunpack.c.l.b16 %v152
  %v441 = vunpack.c.l.b16 %v153
  %v442 = vunpack.c.l.b16 %v154
  %v443 = vunpack.c.l.b16 %v155
  %v444 = vunpack.c.l.b16 %v156
  %v445 = vunpack.c.l.b16 %v157
  %v446 = vunpack.c.l.b16 %v158
  %v447 = vunpack.c.l.b16 %v159
  %v448 = vunpack.c.l.b16 %v160
  %v449 = vunpack.c.l.b16 %v161
  %v450 = vunpack.c.l.b16 %v162
  %v451 = vunpack.c.l.b16 %v163
  %v452 = vpack.c.b16 %v325, %v324
  %v453 = vpack.c.b16 %v327, %v326
  %v454 = vpack.c.b16 %v329, %v328
  %v455 = vpack.c.b16 %v331, %v330
  %v456 = vpack.c.b16 %v333, %v332
  %v457 = vpack.c.b16 %v335, %v334
  %v458 = vpack.c.b16 %v337, %v336
  %v459 = vpack.c.b16 %v339, %v338
  %v460 = vpack.c.b16 %v341, %v340
  %v461 = vpack.c.b16 %v343, %v342
  %v462 = vpack.c.b16 %v345, %v344
  %v463 = vpack.c.b16 %v347, %v346
  %v464 = vpack.c.b16 %v349, %v348
  %v465 = vpack.c.b16 %v351, %v350
  %v466 = vpack.c.b16 %v353, %v352
  %v467 = vpack.c.b16 %v355, %v354
  %v468 = vpack.c.b16 %v357, %v356
  %v469 = vpack.c.b16 %v359, %v358
  %v470 = vpack.c.b16 %v361, %v360
  %v471 = vpack.c.b16 %v363, %v362
  %v472 = vpack.c.b16 %v365, %v364
  %v473 = vpack.c.b16 %v367, %v366
  %v474 = vpack.c.b16 %v369, %v368
  %v475 = vpack.c.b16 %v371, %v370
  %v476 = vpack.c.b16 %v373, %v372
  %v477 = vpack.c.b16 %v375, %v374
  %v478 = vpack.c.b16 %v377, %v376
  %v479 = vpack.c.b16 %v379, %v378
  %v480 = vpack.c.b16 %v381, %v380
  %v481 = vpack.c.b16 %v383, %v382
  %v482 = vpack.c.b16 %v385, %v384
  %v483 = vpack.c.b16 %v387, %v386
  %v484 = vpack.c.b16 %v389, %v388
  %v485 = vpack.c.b16 %v391, %v390
  %v486 = vpack.c.b16 %v393, %v392
  %v487 = vpack.c.b16 %v395, %v394
  %v488 = vpack.c.b16 %v397, %v396
  %v489 = vpack.c.b16 %v399, %v398
  %v490 = vpack.c.b16 %v401, %v400
  %v491 = vpack.c.b16 %v403, %v402
  %v492 = vpack.c.b16 %v405, %v404
  %v493 = vpack.c.b16 %v407, %v406
  %v494 = vpack.c.b16 %v409, %v408
  %v495 = vpack.c.b16 %v411, %v410
  %v496 = vpack.c.b16 %v413, %v412
  %v497 = vpack.c.b16 %v415, %v414
  %v498 = vpack.c.b16 %v417, %v416
  %v499 = vpack.c.b16 %v419, %v418
  %v500 = vpack.c.b16 %v421, %v420
  %v501 = vpack.c.b16 %v423, %v422
  %v502 = vpack.c.b16 %v425, %v424
  %v503 = vpack.c.b16 %v427, %v426
  %v504 = vpack.c.b16 %v429, %v428
  %v505 = vpack.c.b16 %v431, %v430
  %v506 = vpack.c.b16 %v433, %v432
  %v507 = vpack.c.b16 %v435, %v434
  %v508 = vpack.c.b16 %v437, %v436
  %v509 = vpack.c.b16 %v439, %v438
  %v510 = vpack.c.b16 %v441, %v440
  %v511 = vpack.c.b16 %v443, %v442
  %v512 = vpack.c.b16 %v445, %v444
  %v513 = vpack.c.b16 %v447, %v446
  %v514 = vpack.c.b16 %v449, %v448
  %v515 = vpack.c.b16 %v451, %v450
  %580 = vmatpush.bf16.msra.mxu0 %v459
  %581 = vmatpush.bf16.msra.mxu0 %v458
  %582 = vmatpush.bf16.msra.mxu0 %v457
  %583 = vmatpush.bf16.msra.mxu0 %v456
  %584 = vmatpush.bf16.msra.mxu0 %v455
  %585 = vmatpush.bf16.msra.mxu0 %v454
  %586 = vmatpush.bf16.msra.mxu0 %v453
  %587 = vmatpush.bf16.msra.mxu0 %v452
  %588 = vmatmul.bf16.gmra.mxu0 %v180
  %v589 = vpop.f32.mrf.mxu0
  %v590 = vadd.f32 %v166, %v589
  %v591 = vpop.f32.mrf.mxu0
  %592 = vdwg.mxu0
  %593 = vmatpush.bf16.msra.mxu0 %v467
  %594 = vmatpush.bf16.msra.mxu0 %v466
  %595 = vmatpush.bf16.msra.mxu0 %v465
  %596 = vmatpush.bf16.msra.mxu0 %v464
  %597 = vmatpush.bf16.msra.mxu0 %v463
  %598 = vmatpush.bf16.msra.mxu0 %v462
  %599 = vmatpush.bf16.msra.mxu0 %v461
  %600 = vmatpush.bf16.msra.mxu0 %v460
  %601 = vmatmul.bf16.gmra.mxu0 %v181
  %v602 = vpop.f32.mrf.mxu0
  %v603 = vadd.f32 %v590, %v602
  %v604 = vpop.f32.mrf.mxu0
  %605 = vdwg.mxu0
  %606 = vmatpush.bf16.msra.mxu0 %v475
  %607 = vmatpush.bf16.msra.mxu0 %v474
  %608 = vmatpush.bf16.msra.mxu0 %v473
  %609 = vmatpush.bf16.msra.mxu0 %v472
  %610 = vmatpush.bf16.msra.mxu0 %v471
  %611 = vmatpush.bf16.msra.mxu0 %v470
  %612 = vmatpush.bf16.msra.mxu0 %v469
  %613 = vmatpush.bf16.msra.mxu0 %v468
  %614 = vmatmul.bf16.gmra.mxu0 %v182
  %v615 = vpop.f32.mrf.mxu0
  %v616 = vadd.f32 %v603, %v615
  %v617 = vpop.f32.mrf.mxu0
  %618 = vdwg.mxu0
  %619 = vmatpush.bf16.msra.mxu0 %v483
  %620 = vmatpush.bf16.msra.mxu0 %v482
  %621 = vmatpush.bf16.msra.mxu0 %v481
  %622 = vmatpush.bf16.msra.mxu0 %v480
  %623 = vmatpush.bf16.msra.mxu0 %v479
  %624 = vmatpush.bf16.msra.mxu0 %v478
  %625 = vmatpush.bf16.msra.mxu0 %v477
  %626 = vmatpush.bf16.msra.mxu0 %v476
  %627 = vmatmul.bf16.gmra.mxu0 %v183
  %v628 = vpop.f32.mrf.mxu0
  %v629 = vadd.f32 %v616, %v628
  %v630 = vpop.f32.mrf.mxu0
  %631 = vdwg.mxu0
  %632 = vmatpush.bf16.msra.mxu0 %v491
  %633 = vmatpush.bf16.msra.mxu0 %v490
  %634 = vmatpush.bf16.msra.mxu0 %v489
  %635 = vmatpush.bf16.msra.mxu0 %v488
  %636 = vmatpush.bf16.msra.mxu0 %v487
  %637 = vmatpush.bf16.msra.mxu0 %v486
  %638 = vmatpush.bf16.msra.mxu0 %v485
  %639 = vmatpush.bf16.msra.mxu0 %v484
  %640 = vmatmul.bf16.gmra.mxu0 %v184
  %v641 = vpop.f32.mrf.mxu0
  %v642 = vadd.f32 %v629, %v641
  %v643 = vpop.f32.mrf.mxu0
  %644 = vdwg.mxu0
  %645 = vmatpush.bf16.msra.mxu0 %v499
  %646 = vmatpush.bf16.msra.mxu0 %v498
  %647 = vmatpush.bf16.msra.mxu0 %v497
  %648 = vmatpush.bf16.msra.mxu0 %v496
  %649 = vmatpush.bf16.msra.mxu0 %v495
  %650 = vmatpush.bf16.msra.mxu0 %v494
  %651 = vmatpush.bf16.msra.mxu0 %v493
  %652 = vmatpush.bf16.msra.mxu0 %v492
  %653 = vmatmul.bf16.gmra.mxu0 %v185
  %v654 = vpop.f32.mrf.mxu0
  %v655 = vadd.f32 %v642, %v654
  %v656 = vpop.f32.mrf.mxu0
  %657 = vdwg.mxu0
  %658 = vmatpush.bf16.msra.mxu0 %v507
  %659 = vmatpush.bf16.msra.mxu0 %v506
  %660 = vmatpush.bf16.msra.mxu0 %v505
  %661 = vmatpush.bf16.msra.mxu0 %v504
  %662 = vmatpush.bf16.msra.mxu0 %v503
  %663 = vmatpush.bf16.msra.mxu0 %v502
  %664 = vmatpush.bf16.msra.mxu0 %v501
  %665 = vmatpush.bf16.msra.mxu0 %v500
  %666 = vmatmul.bf16.gmra.mxu0 %v186
  %v667 = vpop.f32.mrf.mxu0
  %v668 = vadd.f32 %v655, %v667
  %v669 = vpop.f32.mrf.mxu0
  %670 = vdwg.mxu0
  %671 = vmatpush.bf16.msra.mxu0 %v515
  %672 = vmatpush.bf16.msra.mxu0 %v514
  %673 = vmatpush.bf16.msra.mxu0 %v513
  %674 = vmatpush.bf16.msra.mxu0 %v512
  %675 = vmatpush.bf16.msra.mxu0 %v511
  %676 = vmatpush.bf16.msra.mxu0 %v510
  %677 = vmatpush.bf16.msra.mxu0 %v509
  %678 = vmatpush.bf16.msra.mxu0 %v508
  %679 = vmatmul.bf16.gmra.mxu0 %v187
  %v680 = vpop.f32.mrf.mxu0
  %v681 = vadd.f32 %v668, %v680
  %v682 = vpop.f32.mrf.mxu0
  %683 = vdwg.mxu0
  %v684 = vmax.f32 %v681, 0.0
  %v685 = vpack.c.bf16 %v684, %v684
  %v686 = vld [vmem:[%s3] sm:$0xf]
  %v687 = vld [vmem:[%s3 + $0x4] sm:$0xf]
  %v688 = vld [vmem:[%s3 + $0x8] sm:$0xf]
  %v689 = vld [vmem:[%s3 + $0xc] sm:$0xf]
  %v690 = vld [vmem:[%s3 + $0x10] sm:$0xf]
  %v691 = vld [vmem:[%s3 + $0x14] sm:$0xf]
  %v692 = vld [vmem:[%s3 + $0x18] sm:$0xf]
  %v693 = vld [vmem:[%s3 + $0x1c] sm:$0xf]
  %v694 = vld [vmem:[%s3 + $0x20] sm:$0xf]
  %v695 = vld [vmem:[%s3 + $0x24] sm:$0xf]
  %v696 = vld [vmem:[%s3 + $0x28] sm:$0xf]
  %v697 = vld [vmem:[%s3 + $0x2c] sm:$0xf]
  %v698 = vld [vmem:[%s3 + $0x30] sm:$0xf]
  %v699 = vld [vmem:[%s3 + $0x34] sm:$0xf]
  %v700 = vld [vmem:[%s3 + $0x38] sm:$0xf]
  %v701 = vld [vmem:[%s3 + $0x3c] sm:$0xf]
  %v702 = vld [vmem:[%s4] sm:$0x1]
  %v704 = vperm.slane %v702, 0
  %v722 = vunpack.c.l.b16 %v686
  %v723 = vunpack.c.l.b16 %v687
  %v724 = vunpack.c.l.b16 %v688
  %v725 = vunpack.c.l.b16 %v689
  %v726 = vunpack.c.l.b16 %v690
  %v727 = vunpack.c.l.b16 %v691
  %v728 = vunpack.c.l.b16 %v692
  %v729 = vunpack.c.l.b16 %v693
  %v730 = vunpack.c.l.b16 %v694
  %v731 = vunpack.c.l.b16 %v695
  %v732 = vunpack.c.l.b16 %v696
  %v733 = vunpack.c.l.b16 %v697
  %v734 = vunpack.c.l.b16 %v698
  %v735 = vunpack.c.l.b16 %v699
  %v736 = vunpack.c.l.b16 %v700
  %v737 = vunpack.c.l.b16 %v701
  %v738 = vpack.c.b16 %v723, %v722
  %v739 = vpack.c.b16 %v725, %v724
  %v740 = vpack.c.b16 %v727, %v726
  %v741 = vpack.c.b16 %v729, %v728
  %v742 = vpack.c.b16 %v731, %v730
  %v743 = vpack.c.b16 %v733, %v732
  %v744 = vpack.c.b16 %v735, %v734
  %v745 = vpack.c.b16 %v737, %v736
  %754 = vmatpush.bf16.msra.mxu0 %v745
  %755 = vmatpush.bf16.msra.mxu0 %v744
  %756 = vmatpush.bf16.msra.mxu0 %v743
  %757 = vmatpush.bf16.msra.mxu0 %v742
  %758 = vmatpush.bf16.msra.mxu0 %v741
  %759 = vmatpush.bf16.msra.mxu0 %v740
  %760 = vmatpush.bf16.msra.mxu0 %v739
  %761 = vmatpush.bf16.msra.mxu0 %v738
  %762 = vmatmul.bf16.gmra.mxu0 %v685
  %v763 = vpop.f32.mrf.mxu0
  %v764 = vadd.f32 %v704, %v763
  %v765 = vpop.f32.mrf.mxu0
  %766 = vdwg.mxu0
  %v767 = vadd.f32 %v764, %v684
  %v768 = vmax.f32 %v767, 0.0
  %v769 = vpack.c.bf16 %v768, %v768
  %v770 = vld [vmem:[%s5] sm:$0xf]
  %v771 = vld [vmem:[%s5 + $0x4] sm:$0xf]
  %v772 = vld [vmem:[%s5 + $0x8] sm:$0xf]
  %v773 = vld [vmem:[%s5 + $0xc] sm:$0xf]
  %v774 = vld [vmem:[%s5 + $0x10] sm:$0xf]
  %v775 = vld [vmem:[%s5 + $0x14] sm:$0xf]
  %v776 = vld [vmem:[%s5 + $0x18] sm:$0xf]
  %v777 = vld [vmem:[%s5 + $0x1c] sm:$0xf]
  %v778 = vld [vmem:[%s5 + $0x20] sm:$0xf]
  %v779 = vld [vmem:[%s5 + $0x24] sm:$0xf]
  %v780 = vld [vmem:[%s5 + $0x28] sm:$0xf]
  %v781 = vld [vmem:[%s5 + $0x2c] sm:$0xf]
  %v782 = vld [vmem:[%s5 + $0x30] sm:$0xf]
  %v783 = vld [vmem:[%s5 + $0x34] sm:$0xf]
  %v784 = vld [vmem:[%s5 + $0x38] sm:$0xf]
  %v785 = vld [vmem:[%s5 + $0x3c] sm:$0xf]
  %v786 = vld [vmem:[%s6] sm:$0x1]
  %v788 = vperm.slane %v786, 0
  %v806 = vunpack.c.l.b16 %v770
  %v807 = vunpack.c.l.b16 %v771
  %v808 = vunpack.c.l.b16 %v772
  %v809 = vunpack.c.l.b16 %v773
  %v810 = vunpack.c.l.b16 %v774
  %v811 = vunpack.c.l.b16 %v775
  %v812 = vunpack.c.l.b16 %v776
  %v813 = vunpack.c.l.b16 %v777
  %v814 = vunpack.c.l.b16 %v778
  %v815 = vunpack.c.l.b16 %v779
  %v816 = vunpack.c.l.b16 %v780
  %v817 = vunpack.c.l.b16 %v781
  %v818 = vunpack.c.l.b16 %v782
  %v819 = vunpack.c.l.b16 %v783
  %v820 = vunpack.c.l.b16 %v784
  %v821 = vunpack.c.l.b16 %v785
  %v822 = vpack.c.b16 %v807, %v806
  %v823 = vpack.c.b16 %v809, %v808
  %v824 = vpack.c.b16 %v811, %v810
  %v825 = vpack.c.b16 %v813, %v812
  %v826 = vpack.c.b16 %v815, %v814
  %v827 = vpack.c.b16 %v817, %v816
  %v828 = vpack.c.b16 %v819, %v818
  %v829 = vpack.c.b16 %v821, %v820
  %838 = vmatpush.bf16.msra.mxu0 %v829
  %839 = vmatpush.bf16.msra.mxu0 %v828
  %840 = vmatpush.bf16.msra.mxu0 %v827
  %841 = vmatpush.bf16.msra.mxu0 %v826
  %842 = vmatpush.bf16.msra.mxu0 %v825
  %843 = vmatpush.bf16.msra.mxu0 %v824
  %844 = vmatpush.bf16.msra.mxu0 %v823
  %845 = vmatpush.bf16.msra.mxu0 %v822
  %846 = vmatmul.bf16.gmra.mxu0 %v769
  %v847 = vpop.f32.mrf.mxu0
  %v848 = vadd.f32 %v788, %v847
  %v849 = vpop.f32.mrf.mxu0
  %850 = vdwg.mxu0
  %v851 = vadd.f32 %v848, %v768
  %v852 = vmax.f32 %v851, 0.0
  %v853 = vpack.c.bf16 %v852, %v852
  %v854 = vld [vmem:[%s7] sm:$0xf]
  %v855 = vld [vmem:[%s7 + $0x4] sm:$0xf]
  %v856 = vld [vmem:[%s7 + $0x8] sm:$0xf]
  %v857 = vld [vmem:[%s7 + $0xc] sm:$0xf]
  %v858 = vld [vmem:[%s7 + $0x10] sm:$0xf]
  %v859 = vld [vmem:[%s7 + $0x14] sm:$0xf]
  %v860 = vld [vmem:[%s7 + $0x18] sm:$0xf]
  %v861 = vld [vmem:[%s7 + $0x1c] sm:$0xf]
  %v862 = vld [vmem:[%s7 + $0x20] sm:$0xf]
  %v863 = vld [vmem:[%s7 + $0x24] sm:$0xf]
  %v864 = vld [vmem:[%s7 + $0x28] sm:$0xf]
  %v865 = vld [vmem:[%s7 + $0x2c] sm:$0xf]
  %v866 = vld [vmem:[%s7 + $0x30] sm:$0xf]
  %v867 = vld [vmem:[%s7 + $0x34] sm:$0xf]
  %v868 = vld [vmem:[%s7 + $0x38] sm:$0xf]
  %v869 = vld [vmem:[%s7 + $0x3c] sm:$0xf]
  %v870 = vld [vmem:[%s8] sm:$0x1]
  %v872 = vperm.slane %v870, 0
  %v890 = vunpack.c.l.b16 %v854
  %v891 = vunpack.c.l.b16 %v855
  %v892 = vunpack.c.l.b16 %v856
  %v893 = vunpack.c.l.b16 %v857
  %v894 = vunpack.c.l.b16 %v858
  %v895 = vunpack.c.l.b16 %v859
  %v896 = vunpack.c.l.b16 %v860
  %v897 = vunpack.c.l.b16 %v861
  %v898 = vunpack.c.l.b16 %v862
  %v899 = vunpack.c.l.b16 %v863
  %v900 = vunpack.c.l.b16 %v864
  %v901 = vunpack.c.l.b16 %v865
  %v902 = vunpack.c.l.b16 %v866
  %v903 = vunpack.c.l.b16 %v867
  %v904 = vunpack.c.l.b16 %v868
  %v905 = vunpack.c.l.b16 %v869
  %v906 = vpack.c.b16 %v891, %v890
  %v907 = vpack.c.b16 %v893, %v892
  %v908 = vpack.c.b16 %v895, %v894
  %v909 = vpack.c.b16 %v897, %v896
  %v910 = vpack.c.b16 %v899, %v898
  %v911 = vpack.c.b16 %v901, %v900
  %v912 = vpack.c.b16 %v903, %v902
  %v913 = vpack.c.b16 %v905, %v904
  %922 = vmatpush.bf16.msra.mxu0 %v913
  %923 = vmatpush.bf16.msra.mxu0 %v912
  %924 = vmatpush.bf16.msra.mxu0 %v911
  %925 = vmatpush.bf16.msra.mxu0 %v910
  %926 = vmatpush.bf16.msra.mxu0 %v909
  %927 = vmatpush.bf16.msra.mxu0 %v908
  %928 = vmatpush.bf16.msra.mxu0 %v907
  %929 = vmatpush.bf16.msra.mxu0 %v906
  %930 = vmatmul.bf16.gmra.mxu0 %v853
  %v931 = vpop.f32.mrf.mxu0
  %v932 = vadd.f32 %v872, %v931
  %v933 = vpop.f32.mrf.mxu0
  %934 = vdwg.mxu0
  %935 = vst [vmem:[%s9] sm:$0xff] %v768
  %936 = vst [vmem:[%s9 + $0x8] sm:$0xff] %v851
  %937 = vst [vmem:[%s9 + $0x10] sm:$0xff] %v932
  // Predicated region
  $region38: #{res_linear_net_forward.1} parent=0 // pred_check
    _
  $region39: #{res_linear_net_forward.1} parent=0 // pred_check_branch
    %939 = sbr.rel (0) target = $region41
  $region40: #{res_linear_net_forward.1} parent=0 // pred_region
    _
  $region41: #{res_linear_net_forward.1} parent=0 // pred_fallthru
    _
  // Predicated region
  $region42: #{res_linear_net_forward.1} parent=0 // pred_check
    _
  $region43: #{res_linear_net_forward.1} parent=0 // pred_check_branch
    %941 = sbr.rel (0) target = $region45
  $region44: #{res_linear_net_forward.1} parent=0 // pred_region
    _
  $region45: #{res_linear_net_forward.1} parent=0 // pred_fallthru
    _

</llo_original>
